<compile_context>
chip_gen: v6e
topology: v6e:2x2x1
jax: 0.10.0
libtpu: 0.0.40
codegen_flags: <defaults>
</compile_context>

<pallas_src>
import functools

import jax
import jax.numpy as jnp
from jax import lax
from jax.experimental import pallas as pl
from jax.experimental.pallas import tpu as pltpu


def _round_up(x, m):
    return (x + m - 1) // m * m


def _vmem_limit_bytes():
    # <= ~48 MiB on v7x (64 MiB physical per TC); up to 96 MiB on v5e/v6e (128 MiB physical).
    try:
        cap = pltpu.get_tpu_info().vmem_capacity_bytes
        return int(min(cap * 3 // 4, 96 * 1024 * 1024))
    except Exception:
        return 48 * 1024 * 1024


# ---------------------------------------------------------------------------------------
# Stage 1: fused key||value projection (runs once per spatial position).
# ---------------------------------------------------------------------------------------
def _kv_proj_kernel(x_ref, wkv_ref, skv_ref, tkv_ref, kv_ref, *, kp):
    # kv = x @ [Wk || Wv]  (bf16 x bf16 -> f32 on the MXU), then folded BN scale/shift (f32).
    kv = jnp.dot(x_ref[...], wkv_ref[...], preferred_element_type=jnp.float32)
    kv = kv * skv_ref[...] + tkv_ref[...]
    # ReLU only on the key columns; both stores are lane-aligned (kp % 128 == 0).
    kv_ref[:, :kp] = jnp.maximum(kv[:, :kp], 0.0).astype(kv_ref.dtype)
    kv_ref[:, kp:] = kv[:, kp:].astype(kv_ref.dtype)


# ---------------------------------------------------------------------------------------
# Stage 2: flash attention (online softmax) + fused output projection.
# ---------------------------------------------------------------------------------------
def _oc_flash_kernel(q_ref, kv_ref, wout_ref, bout_ref, o_ref,
                     m_scr, l_scr, acc_scr, *, kp, sub_k):
    ki = pl.program_id(2)
    nk = pl.num_programs(2)

    @pl.when(ki == 0)
    def _init():
        m_scr[...] = jnp.full_like(m_scr, -jnp.inf)
        l_scr[...] = jnp.zeros_like(l_scr)
        acc_scr[...] = jnp.zeros_like(acc_scr)

    q = q_ref[...]                        # (TQ, Kp) compute dtype; Kc^-0.25 already folded in.
    vp = kv_ref.shape[1] - kp
    n_sub = kv_ref.shape[0] // sub_k

    # Statically unrolled sub-tile loop: one DMA'd k tile, several straight-line iterations
    # so the LLO scheduler can co-issue MXU (qk^T, p@v), EUP (exp) and VALU (rescale) slots;
    # sub_k=128 keeps the (TQ, sub_k) f32 sim tile within the vreg file.
    for s in range(n_sub):
        rows = pl.ds(s * sub_k, sub_k)
        k = kv_ref[rows, pl.ds(0, kp)]                       # (TKs, Kp)
        v = kv_ref[rows, pl.ds(kp, vp)]                      # (TKs, Vp)
        # sim = q @ k^T: contract the minor dim of both operands (no transpose materialized).
        sim = lax.dot_general(q, k, (((1,), (1,)), ((), ())),
                              preferred_element_type=jnp.float32)    # (TQ, TKs) f32

        m_prev = m_scr[...]
        m_new = jnp.maximum(m_prev, jnp.max(sim, axis=-1, keepdims=True))
        alpha = jnp.exp(m_prev - m_new)
        p = jnp.exp(sim - m_new)                             # f32 exp (v5e-safe EUP path)
        l_scr[...] = alpha * l_scr[...] + jnp.sum(p, axis=-1, keepdims=True)
        acc_scr[...] = alpha * acc_scr[...] + jnp.dot(
            p.astype(v.dtype), v, preferred_element_type=jnp.float32)
        m_scr[...] = m_new

    @pl.when(ki == nk - 1)
    def _finalize():
        # Exact reciprocal (EUP has slack; keeps closer parity with the PyTorch module).
        ctx = acc_scr[...] * pl.reciprocal(l_scr[...], approx=False)
        out = jnp.dot(ctx.astype(wout_ref.dtype), wout_ref[...],
                      preferred_element_type=jnp.float32) + bout_ref[...]
        o_ref[...] = jnp.maximum(out, 0.0).astype(o_ref.dtype)


# ---------------------------------------------------------------------------------------
# Wrappers.
# ---------------------------------------------------------------------------------------
def base_oc_context_nhwc(x_nhwc, params, *, key_channels,
                         block_q=256, block_k=512, sub_k=128,
                         compute_dtype=jnp.bfloat16):
    """x_nhwc: [N, H, W, C].  Returns [N, H, W, Cout] float32."""
    N, H, W, C = x_nhwc.shape
    HW = H * W
    (wk, sk, tk, wv, bv, wprj, bprj, wf, sf, tf) = params
    Kc, Vc, Cout = wk.shape[1], wv.shape[1], wf.shape[1]

    block_q = min(block_q, HW)
    block_k = min(block_k, HW)
    sub_k = min(sub_k, block_k)
    assert HW % block_q == 0 and HW % block_k == 0, "spatial size must divide tile sizes"
    assert block_k % sub_k == 0
    assert block_q % 16 == 0 and sub_k % 16 == 0      # bf16 sublane packing
    nq, nk = HW // block_q, HW // block_k

    cd = jnp.dtype(compute_dtype)
    f32 = jnp.float32
    Kp, Vp, Cop = _round_up(Kc, 128), _round_up(Vc, 128), _round_up(Cout, 128)

    # Fused key||value projection weights.  Kc^-0.5 is folded as c = Kc^-0.25 into the key
    # columns (q and k share the projection, so q@k^T restores Kc^-0.5; ReLU commutes with
    # the positive scale).  Padded columns have scale/shift/weight 0 -> exactly zero.
    c = float(key_channels) ** -0.25
    wkv = jnp.zeros((C, Kp + Vp), f32).at[:, :Kc].set(wk).at[:, Kp:Kp + Vc].set(wv)
    skv = jnp.zeros((1, Kp + Vp), f32).at[:, :Kc].set(sk * c).at[:, Kp:Kp + Vp].set(1.0)
    tkv = jnp.zeros((1, Kp + Vp), f32).at[:, :Kc].set(tk * c).at[:, Kp:Kp + Vc].set(bv)

    # Fold W conv + conv_bn conv + final BN scale/shift into one (Vc, Cout) weight + bias.
    w_out = wprj @ (wf * sf)                              # (Vc, Cout)
    b_out = (bprj @ wf) * sf + tf                         # (1, Cout)
    w_out_p = jnp.zeros((Vp, Cop), f32).at[:Vc, :Cout].set(w_out).astype(cd)
    b_out_p = jnp.zeros((1, Cop), f32).at[:, :Cout].set(b_out)

    wkv = wkv.astype(cd)                                  # MXU operand
    x2d = x_nhwc.reshape(N * HW, C).astype(cd)

    vmem_limit = _vmem_limit_bytes()
    itemsize = cd.itemsize
    rows = N * HW

    # === Stage 1: K||V projection, once per spatial position (no recompute). ============
    block_r = block_k                                     # divides rows since HW % block_k == 0
    wspec1 = lambda i: (0, 0)
    cost1 = pl.CostEstimate(
        flops=2 * rows * C * (Kp + Vp),
        transcendentals=0,
        bytes_accessed=itemsize * (rows * C + rows * (Kp + Vp) + C * (Kp + Vp))
                       + 8 * (Kp + Vp))
    kv_all = pl.pallas_call(
        functools.partial(_kv_proj_kernel, kp=Kp),
        out_shape=jax.ShapeDtypeStruct((rows, Kp + Vp), cd),
        grid=(rows // block_r,),
        in_specs=[
            pl.BlockSpec((block_r, C), lambda i: (i, 0)),
            pl.BlockSpec((C, Kp + Vp), wspec1),
            pl.BlockSpec((1, Kp + Vp), wspec1),
            pl.BlockSpec((1, Kp + Vp), wspec1),
        ],
        out_specs=pl.BlockSpec((block_r, Kp + Vp), lambda i: (i, 0)),
        compiler_params=pltpu.CompilerParams(
            dimension_semantics=("parallel",),
            vmem_limit_bytes=vmem_limit,
        ),
        cost_estimate=cost1,
    )(x2d, wkv, skv, tkv)

    # === Stage 2: flash attention + fused output projection. ============================
    wspec2 = lambda n, qi, ki: (0, 0)
    cost2 = pl.CostEstimate(
        flops=N * (2 * HW * HW * (Kp + Vp) + 2 * HW * Vp * Cop),
        transcendentals=N * HW * HW,
        bytes_accessed=(itemsize * rows * Kp                 # q side: each row read once
                        + itemsize * rows * (Kp + Vp) * nq   # k side: re-streamed per q tile
                        + 4 * rows * Cop                     # f32 output
                        + itemsize * Vp * Cop + 4 * Cop))
    out2d = pl.pallas_call(
        functools.partial(_oc_flash_kernel, kp=Kp, sub_k=sub_k),
        out_shape=jax.ShapeDtypeStruct((rows, Cop), f32),
        grid=(N, nq, nk),
        in_specs=[
            # query tile = key part of the precomputed projection (f_query IS f_key)
            pl.BlockSpec((block_q, Kp), lambda n, qi, ki: (n * nq + qi, 0)),
            # key||value tile
            pl.BlockSpec((block_k, Kp + Vp), lambda n, qi, ki: (n * nk + ki, 0)),
            pl.BlockSpec((Vp, Cop), wspec2),
            pl.BlockSpec((1, Cop), wspec2),
        ],
        out_specs=pl.BlockSpec((block_q, Cop), lambda n, qi, ki: (n * nq + qi, 0)),
        scratch_shapes=[
            pltpu.VMEM((block_q, 1), f32),    # running max
            pltpu.VMEM((block_q, 1), f32),    # running sum
            pltpu.VMEM((block_q, Vp), f32),   # running weighted-value accumulator
        ],
        compiler_params=pltpu.CompilerParams(
            dimension_semantics=("parallel", "parallel", "arbitrary"),
            vmem_limit_bytes=vmem_limit,
        ),
        cost_estimate=cost2,
    )(kv_all, kv_all, w_out_p, b_out_p)

    return out2d[:, :Cout].reshape(N, H, W, Cout)


def base_oc_context(x_nchw, params, *, key_channels, block_q=256, block_k=512,
                    sub_k=128, compute_dtype=jnp.bfloat16):
    """NCHW adapter matching the PyTorch module layout.  Prefer base_oc_context_nhwc in a
    real model to avoid the two extra NCHW<->NHWC HBM passes; here the input transpose is
    at least done in the (half-width) compute dtype."""
    x_nhwc = jnp.transpose(x_nchw.astype(jnp.dtype(compute_dtype)), (0, 2, 3, 1))
    out = base_oc_context_nhwc(x_nhwc, params, key_channels=key_channels,
                               block_q=block_q, block_k=block_k, sub_k=sub_k,
                               compute_dtype=compute_dtype)
    return jnp.transpose(out, (0, 3, 1, 2))


# ---------------------------------------------------------------------------------------
# Reference & test harness.
# ---------------------------------------------------------------------------------------
def _reference(x_nchw, params, *, key_channels):
    """Pure-jnp f32 reference of the same forward math (unfused, for validation)."""
    N, C, H, W = x_nchw.shape
    HW = H * W
    (wk, sk, tk, wv, bv, wprj, bprj, wf, sf, tf) = params
    x = jnp.transpose(x_nchw, (0, 2, 3, 1)).reshape(N, HW, C)
    qk = jnp.maximum(x @ wk * sk + tk, 0.0)
    v = x @ wv + bv
    sim = jnp.einsum("nqc,nkc->nqk", qk, qk) * (key_channels ** -0.5)
    sim = jax.nn.softmax(sim, axis=-1)
    ctx = jnp.einsum("nqk,nkc->nqc", sim, v) @ wprj + bprj
    out = jnp.maximum(ctx @ wf * sf + tf, 0.0)
    Cout = wf.shape[1]
    return jnp.transpose(out.reshape(N, H, W, Cout), (0, 3, 1, 2))


def _fold_bn(conv_bias, gamma, beta, mean, var, eps=1e-5):
    scale = gamma / jnp.sqrt(var + eps)
    shift = (conv_bias - mean) * scale + beta
    return scale[None, :], shift[None, :]


if __name__ == "__main__":
    # Small, module-consistent shapes. conv_bn_dropout requires in_channels == out_channels.
    N, C, H, W = 2, 32, 16, 16
    Kc, Vc, Cout = 16, 16, C

    key = jax.random.PRNGKey(0)
    ks = jax.random.split(key, 12)
    x = jax.random.normal(ks[0], (N, C, H, W), jnp.float32)

    # Deterministic synthetic parameters.  (The original module zero-inits W's conv; small
    # random values are used so the attention path is actually exercised.)
    wk = 0.1 * jax.random.normal(ks[1], (C, Kc), jnp.float32)       # f_key conv weight (C -> Kc)
    bk = 0.1 * jax.random.normal(ks[2], (Kc,), jnp.float32)
    gamma_k = 1.0 + 0.1 * jax.random.normal(ks[3], (Kc,), jnp.float32)
    beta_k = 0.1 * jax.random.normal(ks[4], (Kc,), jnp.float32)
    mean_k = jnp.zeros((Kc,), jnp.float32)
    var_k = jnp.ones((Kc,), jnp.float32)
    sk, tk = _fold_bn(bk, gamma_k, beta_k, mean_k, var_k)

    wv = 0.1 * jax.random.normal(ks[5], (C, Vc), jnp.float32)       # f_value conv weight
    bv = (0.1 * jax.random.normal(ks[6], (Vc,), jnp.float32))[None, :]

    wprj = 0.1 * jax.random.normal(ks[7], (Vc, Cout), jnp.float32)  # W conv (Vc -> Cout)
    bprj = (0.1 * jax.random.normal(ks[8], (Cout,), jnp.float32))[None, :]

    wf = 0.1 * jax.random.normal(ks[9], (Cout, Cout), jnp.float32)  # conv_bn_dropout conv
    bf = 0.1 * jax.random.normal(ks[10], (Cout,), jnp.float32)
    gamma_f = 1.0 + 0.1 * jax.random.normal(ks[11], (Cout,), jnp.float32)
    beta_f = jnp.zeros((Cout,), jnp.float32)
    mean_f = jnp.zeros((Cout,), jnp.float32)
    var_f = jnp.ones((Cout,), jnp.float32)
    sf, tf = _fold_bn(bf, gamma_f, beta_f, mean_f, var_f)

    # TODO(synk): training-mode Dropout2d (random channel zeroing) and training-mode
    # BatchNorm statistics are not implemented (eval-mode forward only).
    params = (wk, sk, tk, wv, bv, wprj, bprj, wf, sf, tf)

    ref = _reference(x, params, key_channels=Kc)

    # Strict-parity mode: f32 MXU operands (validates the kernel math tightly).
    out_f32 = base_oc_context(x, params, key_channels=Kc, compute_dtype=jnp.float32)
    out_f32 = jax.block_until_ready(out_f32)
    assert out_f32.shape == (N, Cout, H, W)
    assert jnp.allclose(out_f32, ref, atol=2e-3, rtol=2e-3), "f32 kernel mismatch vs reference"

    # Default fast path: bf16 MXU operands with f32 accumulation / f32 softmax.
    out_bf16 = base_oc_context(x, params, key_channels=Kc)
    out_bf16 = jax.block_until_ready(out_bf16)
    assert out_bf16.shape == (N, Cout, H, W)
    assert jnp.allclose(out_bf16, ref, atol=5e-2, rtol=5e-2), "bf16 kernel mismatch vs reference"

    print("KERNEL_OK")
</pallas_src>

<mosaic_0001>
module attributes {stable_mosaic.version = 11 : i64} {
  func.func @_kv_proj_kernel(%arg0: i32, %arg1: memref<256x32xf32, #tpu.memory_space<vmem>>, %arg2: memref<32x256xf32, #tpu.memory_space<vmem>>, %arg3: memref<1x256xf32, #tpu.memory_space<vmem>>, %arg4: memref<1x256xf32, #tpu.memory_space<vmem>>, %arg5: memref<256x256xf32, #tpu.memory_space<vmem>>) attributes {dimension_semantics = [#tpu.dimension_semantics<parallel>], iteration_bounds = array<i64: 2>, scalar_prefetch = 0 : i64, scratch_operands = 0 : i64, tpu.core_type = #tpu.core_type<tc>, window_params = [{transform_indices = @transform_0, window_bounds = array<i64: 256, 32>}, {pipeline_mode = #tpu.pipeline_mode<synchronous>, transform_indices = @transform_1, window_bounds = array<i64: 32, 256>}, {pipeline_mode = #tpu.pipeline_mode<synchronous>, transform_indices = @transform_2, window_bounds = array<i64: 1, 256>}, {pipeline_mode = #tpu.pipeline_mode<synchronous>, transform_indices = @transform_3, window_bounds = array<i64: 1, 256>}, {transform_indices = @transform_4, window_bounds = array<i64: 256, 256>}]} {
    %c0 = arith.constant 0 : index
    %c0_0 = arith.constant 0 : index
    %0 = vector.load %arg1[%c0, %c0_0] : memref<256x32xf32, #tpu.memory_space<vmem>>, vector<256x32xf32>
    %c0_1 = arith.constant 0 : index
    %c0_2 = arith.constant 0 : index
    %1 = vector.load %arg2[%c0_1, %c0_2] : memref<32x256xf32, #tpu.memory_space<vmem>>, vector<32x256xf32>
    %cst = arith.constant dense<0.000000e+00> : vector<256x256xf32>
    %2 = tpu.matmul %0, %1, %cst {dimension_numbers = #tpu.dot_dimension_numbers<[1], [0], [0], [1], [0, 0, 1, 1], [], []>} : vector<256x32xf32>, vector<32x256xf32>, vector<256x256xf32> -> vector<256x256xf32>
    %c0_3 = arith.constant 0 : index
    %c0_4 = arith.constant 0 : index
    %3 = vector.load %arg3[%c0_3, %c0_4] : memref<1x256xf32, #tpu.memory_space<vmem>>, vector<1x256xf32>
    %4 = vector.broadcast %3 : vector<1x256xf32> to vector<256x256xf32>
    %5 = arith.mulf %2, %4 : vector<256x256xf32>
    %c0_5 = arith.constant 0 : index
    %c0_6 = arith.constant 0 : index
    %6 = vector.load %arg4[%c0_5, %c0_6] : memref<1x256xf32, #tpu.memory_space<vmem>>, vector<1x256xf32>
    %7 = vector.broadcast %6 : vector<1x256xf32> to vector<256x256xf32>
    %8 = arith.addf %5, %7 : vector<256x256xf32>
    %9 = vector.extract_strided_slice %8 {offsets = [0, 0], sizes = [256, 128], strides = [1, 1]} : vector<256x256xf32> to vector<256x128xf32>
    %cst_7 = arith.constant 0.000000e+00 : f32
    %10 = vector.broadcast %cst_7 : f32 to vector<256x128xf32>
    %11 = arith.maximumf %9, %10 : vector<256x128xf32>
    %c0_8 = arith.constant 0 : index
    %c0_9 = arith.constant 0 : index
    %12 = vector.load %arg5[%c0_8, %c0_9] : memref<256x256xf32, #tpu.memory_space<vmem>>, vector<256x128xf32>
    tpu.vector_store %arg5[%c0_8, %c0_9], %11 {strides = array<i32>} : memref<256x256xf32, #tpu.memory_space<vmem>>, vector<256x128xf32>,
    %13 = vector.extract_strided_slice %8 {offsets = [0, 128], sizes = [256, 128], strides = [1, 1]} : vector<256x256xf32> to vector<256x128xf32>
    %c0_10 = arith.constant 0 : index
    %c128 = arith.constant 128 : index
    %14 = vector.load %arg5[%c0_10, %c128] : memref<256x256xf32, #tpu.memory_space<vmem>>, vector<256x128xf32>
    tpu.vector_store %arg5[%c0_10, %c128], %13 {strides = array<i32>} : memref<256x256xf32, #tpu.memory_space<vmem>>, vector<256x128xf32>,
    return
  }
  func.func @transform_0(%arg0: i32) -> (i32, i32) {
    %c0_i32 = arith.constant 0 : i32
    %c0_i32_0 = arith.constant 0 : i32
    return %arg0, %c0_i32 : i32, i32
  }
  func.func @transform_1(%arg0: i32) -> (i32, i32) {
    %c0_i32 = arith.constant 0 : i32
    %c0_i32_0 = arith.constant 0 : i32
    %c0_i32_1 = arith.constant 0 : i32
    return %c0_i32, %c0_i32_0 : i32, i32
  }
  func.func @transform_2(%arg0: i32) -> (i32, i32) {
    %c0_i32 = arith.constant 0 : i32
    %c0_i32_0 = arith.constant 0 : i32
    %c0_i32_1 = arith.constant 0 : i32
    return %c0_i32, %c0_i32_0 : i32, i32
  }
  func.func @transform_3(%arg0: i32) -> (i32, i32) {
    %c0_i32 = arith.constant 0 : i32
    %c0_i32_0 = arith.constant 0 : i32
    %c0_i32_1 = arith.constant 0 : i32
    return %c0_i32, %c0_i32_0 : i32, i32
  }
  func.func @transform_4(%arg0: i32) -> (i32, i32) {
    %c0_i32 = arith.constant 0 : i32
    %c0_i32_0 = arith.constant 0 : i32
    return %arg0, %c0_i32 : i32, i32
  }
}

</mosaic_0001>

<llo_original>
// kernel: tpu_custom_call.1
$region0: #{tpu_custom_call.1}
  #allocation0 [shape = 'u32[]', space=smem, size = 0x4, offset = 0x4, fixed_abs, tag = 'smem constant byte address 0x4 - core index']
  #allocation1 [shape = 'u32[144,128]{1,0:T(1,128)}', space=vmem, size = 0x12000, scoped, tag = 'internal scratch']
  %s0 = inlined_call_operand.vmem [shape: f32[512,32], index: 0, kind: input, shape index: {}]
  %s1 = inlined_call_operand.vmem [shape: f32[32,256], index: 1, kind: input, shape index: {}]
  %s2 = inlined_call_operand.vmem [shape: f32[1,256], index: 2, kind: input, shape index: {}]
  %s3 = inlined_call_operand.vmem [shape: f32[1,256], index: 3, kind: input, shape index: {}]
  %s4 = inlined_call_operand.hbm [shape: f32[512,256], index: 4, kind: output, shape index: {}]
  %s5 = sld [smem:[#allocation0]]
  $region49: #{tpu_custom_call.1} parent=0
    _
  %s7 = ssub.s32 1, %s5
  %s8 = scalar_select 0, %s7, %s5
  $region1: #{tpu_custom_call.1} parent=0
    #allocation2 [shape = 'u8[524288]{0}', space=vmem, size = 0x80000, scoped, tag = 'output window, operand 0']
    #allocation3 [shape = 's32[2]{0}', space=sflag, size = 0x8, scoped, tag = 'scoped memory for tpu_custom_call.1']
    %9 = vsyncpa [#allocation3], 0
    %s10 = scalar_lea.sflag [#allocation3], 1
    %11 = vsyncpa %s10, 0
    loop: start=0, step=1, limit=4
    $region2: #{tpu_custom_call.1} parent=1 // loop_pre_header
      _
    $region3: #{tpu_custom_call.1} parent=1 // loop_header
      %s13 = sphi 0, %s17
      %p14 = scmp.ge.s32.totalorder %s13, 4
      %s23 = sphi 0, %s25
      %s26 = sphi 0, %s23
      %s27 = sphi 0, %s26
      %s43 = sphi 0, %s27
      %s47 = sphi 0, %s47
      %s49 = sphi 0, %s47
      %s50 = sphi 0, %s49
      %s64 = sphi 0, %s50
      %s68 = sphi 0, %s68
      %s70 = sphi 0, %s68
      %s71 = sphi 0, %s70
      %s85 = sphi 0, %s71
      %s89 = sphi 0, %s89
      %s91 = sphi 0, %s89
      %s92 = sphi 0, %s91
      %s106 = sphi 0, %s92
      %s112 = sphi 0, %s114
      %s115 = sphi 0, %s112
      %s116 = sphi 0, %s115
      %s132 = sphi 0, %s116
    $region4: #{tpu_custom_call.1} parent=1 // loop_header_branch
      %16 = sbr.rel (%p14) target = $region8
    $region5: #{tpu_custom_call.1} parent=1 // loop_body
      %s18 = ssub.s32 %s13, 1
      %s19 = ssub.s32 %s13, 2
      %s20 = sadd.s32 %s13, 1
      %s21 = ssub.s32 %s13, %s20
      %p22 = scmp.eq.s32.totalorder %s21, 0
      %s24 = sadd.s32 %s23, 1
      %s25 = scalar_select %p22, %s23, %s24
      %p28 = pneg %p22
      %p29 = scmp.eq.s32.totalorder %s13, 1
      %p30 = por %p28, %p29
      %p31 = scmp.ne.s32.totalorder %s23, %s26
      %p32 = scmp.eq.s32.totalorder %s13, 0
      %p33 = por %p31, %p32
      %p34 = scmp.ne.s32.totalorder %s23, %s26
      %p35 = scmp.eq.s32.totalorder %s18, 1
      %p36 = por %p34, %p35
      %p37 = scmp.ne.s32.totalorder %s26, %s27
      %p38 = scmp.eq.s32.totalorder %s18, 0
      %p39 = por %p37, %p38
      %p40 = scmp.ne.s32.totalorder %s26, %s27
      %p41 = scmp.eq.s32.totalorder %s19, 1
      %p42 = por %p40, %p41
      %p44 = scmp.ne.s32.totalorder %s27, %s43
      %p45 = scmp.eq.s32.totalorder %s19, 0
      %p46 = por %p44, %p45
      %s48 = sadd.s32 %s47, 1
      %p51 = scmp.eq.s32.totalorder %s13, 1
      %p52 = scmp.ne.s32.totalorder %s47, %s49
      %p53 = scmp.eq.s32.totalorder %s13, 0
      %p54 = por %p52, %p53
      %p55 = scmp.ne.s32.totalorder %s47, %s49
      %p56 = scmp.eq.s32.totalorder %s18, 1
      %p57 = por %p55, %p56
      %p58 = scmp.ne.s32.totalorder %s49, %s50
      %p59 = scmp.eq.s32.totalorder %s18, 0
      %p60 = por %p58, %p59
      %p61 = scmp.ne.s32.totalorder %s49, %s50
      %p62 = scmp.eq.s32.totalorder %s19, 1
      %p63 = por %p61, %p62
      %p65 = scmp.ne.s32.totalorder %s50, %s64
      %p66 = scmp.eq.s32.totalorder %s19, 0
      %p67 = por %p65, %p66
      %s69 = sadd.s32 %s68, 1
      %p72 = scmp.eq.s32.totalorder %s13, 1
      %p73 = scmp.ne.s32.totalorder %s68, %s70
      %p74 = scmp.eq.s32.totalorder %s13, 0
      %p75 = por %p73, %p74
      %p76 = scmp.ne.s32.totalorder %s68, %s70
      %p77 = scmp.eq.s32.totalorder %s18, 1
      %p78 = por %p76, %p77
      %p79 = scmp.ne.s32.totalorder %s70, %s71
      %p80 = scmp.eq.s32.totalorder %s18, 0
      %p81 = por %p79, %p80
      %p82 = scmp.ne.s32.totalorder %s70, %s71
      %p83 = scmp.eq.s32.totalorder %s19, 1
      %p84 = por %p82, %p83
      %p86 = scmp.ne.s32.totalorder %s71, %s85
      %p87 = scmp.eq.s32.totalorder %s19, 0
      %p88 = por %p86, %p87
      %s90 = sadd.s32 %s89, 1
      %p93 = scmp.eq.s32.totalorder %s13, 1
      %p94 = scmp.ne.s32.totalorder %s89, %s91
      %p95 = scmp.eq.s32.totalorder %s13, 0
      %p96 = por %p94, %p95
      %p97 = scmp.ne.s32.totalorder %s89, %s91
      %p98 = scmp.eq.s32.totalorder %s18, 1
      %p99 = por %p97, %p98
      %p100 = scmp.ne.s32.totalorder %s91, %s92
      %p101 = scmp.eq.s32.totalorder %s18, 0
      %p102 = por %p100, %p101
      %p103 = scmp.ne.s32.totalorder %s91, %s92
      %p104 = scmp.eq.s32.totalorder %s19, 1
      %p105 = por %p103, %p104
      %p107 = scmp.ne.s32.totalorder %s92, %s106
      %p108 = scmp.eq.s32.totalorder %s19, 0
      %p109 = por %p107, %p108
      %s110 = ssub.s32 %s13, %s20
      %p111 = scmp.eq.s32.totalorder %s110, 0
      %s113 = sadd.s32 %s112, 1
      %s114 = scalar_select %p111, %s112, %s113
      %p117 = pneg %p111
      %p118 = scmp.eq.s32.totalorder %s13, 1
      %p119 = por %p117, %p118
      %p120 = scmp.ne.s32.totalorder %s112, %s115
      %p121 = scmp.eq.s32.totalorder %s13, 0
      %p122 = por %p120, %p121
      %p123 = scmp.ne.s32.totalorder %s112, %s115
      %p124 = scmp.eq.s32.totalorder %s18, 1
      %p125 = por %p123, %p124
      %p126 = scmp.ne.s32.totalorder %s115, %s116
      %p127 = scmp.eq.s32.totalorder %s18, 0
      %p128 = por %p126, %p127
      %p129 = scmp.ne.s32.totalorder %s115, %s116
      %p130 = scmp.eq.s32.totalorder %s19, 1
      %p131 = por %p129, %p130
      %p133 = scmp.ne.s32.totalorder %s116, %s132
      %p134 = scmp.eq.s32.totalorder %s19, 0
      %p135 = por %p133, %p134
      %p136 = scmp.le.s32.totalorder 1, %s13
      %p137 = scmp.lt.s32.totalorder %s13, 3
      %p138 = pnand %p136, %p137
      %p139 = pneg %p138
      // Predicated region
      $region9: #{tpu_custom_call.1} parent=5 // pred_check
        _
      $region10: #{tpu_custom_call.1} parent=5 // pred_check_branch
        %141 = sbr.rel (%p138) target = $region12
      $region11: #{tpu_custom_call.1} parent=5 // pred_region
        %s142 = ssub.s32 %s13, 1
        // Predicated region
        $region13: #{tpu_custom_call.1} parent=11 // pred_check
          %p143 = pneg %p60
        $region14: #{tpu_custom_call.1} parent=11 // pred_check_branch
          %145 = sbr.rel (%p143) target = $region16
        $region15: #{tpu_custom_call.1} parent=11 // pred_region
          _
        $region16: #{tpu_custom_call.1} parent=11 // pred_fallthru
          _
        // Predicated region
        $region17: #{tpu_custom_call.1} parent=11 // pred_check
          %p146 = pneg %p81
        $region18: #{tpu_custom_call.1} parent=11 // pred_check_branch
          %148 = sbr.rel (%p146) target = $region20
        $region19: #{tpu_custom_call.1} parent=11 // pred_region
          _
        $region20: #{tpu_custom_call.1} parent=11 // pred_fallthru
          _
        // Predicated region
        $region21: #{tpu_custom_call.1} parent=11 // pred_check
          %p149 = pneg %p102
        $region22: #{tpu_custom_call.1} parent=11 // pred_check_branch
          %151 = sbr.rel (%p149) target = $region24
        $region23: #{tpu_custom_call.1} parent=11 // pred_region
          _
        $region24: #{tpu_custom_call.1} parent=11 // pred_fallthru
          _
      $region12: #{tpu_custom_call.1} parent=5 // pred_fallthru
        _
      %p152 = scmp.lt.s32.totalorder %s13, 2
      // Predicated region
      $region25: #{tpu_custom_call.1} parent=5 // pred_check
        %p153 = pneg %p152
      $region26: #{tpu_custom_call.1} parent=5 // pred_check_branch
        %155 = sbr.rel (%p153) target = $region28
      $region27: #{tpu_custom_call.1} parent=5 // pred_region
        // Predicated region
        $region29: #{tpu_custom_call.1} parent=27 // pred_check
          %p156 = pneg %p33
        $region30: #{tpu_custom_call.1} parent=27 // pred_check_branch
          %158 = sbr.rel (%p156) target = $region32
        $region31: #{tpu_custom_call.1} parent=27 // pred_region
          %s159 = smul.u32 32, %s13
          %p160 = scmp.lt.s32.totalorder %s159, 63
          %s161 = scalar_select %p160, %s159, 63
          %s162 = smul.addr %s161, 8
          %s163 = scalar_lea.vmem %s0, %s162
          %s164 = smul.u32 32, %s13
        $region32: #{tpu_custom_call.1} parent=27 // pred_fallthru
          _
      $region28: #{tpu_custom_call.1} parent=5 // pred_fallthru
        _
      %p165 = scmp.le.s32.totalorder 1, %s13
      %p166 = scmp.lt.s32.totalorder %s13, 3
      %p167 = pnand %p165, %p166
      %p168 = pneg %p167
      // Predicated region
      $region33: #{tpu_custom_call.1} parent=5 // pred_check
        _
      $region34: #{tpu_custom_call.1} parent=5 // pred_check_branch
        %170 = sbr.rel (%p167) target = $region36
      $region35: #{tpu_custom_call.1} parent=5 // pred_region
        %s171 = ssub.s32 %s13, 1
        %s172 = smul.u32 32, %s18
        %p173 = scmp.lt.s32.totalorder %s172, 63
        %s174 = scalar_select %p173, %s172, 63
        %s175 = smul.addr %s174, 8
        %s176 = scalar_lea.vmem %s0, %s175
        %p177 = pneg %p39
        %p178 = pneg %p36
        %p179 = pneg %p60
        %p180 = pneg %p57
        %p181 = pneg %p81
        %p182 = pneg %p78
        %p183 = pneg %p102
        %p184 = pneg %p99
        %p185 = pneg %p128
        %p186 = pneg %p125
        %s187 = sand.u32 %s115, 1
        %s188 = scalar_lea.sflag [#allocation3], %s187
        %s189 = sand.u32 %s115, 1
        %s190 = smul.addr %s189, 512
        %s191 = scalar_lea.vmem [#allocation2], %s190
        %s192 = smul.u32 32, %s18
        %p193 = scmp.lt.s32.totalorder %s192, 63
        %s194 = scalar_select %p193, %s192, 63
        %s195 = smul.addr %s194, 8
        %s196 = scalar_lea.vmem %s0, %s195
        %s197 = smul.u32 32, %s18
        %s198 = smul.u32 32, %s18
        %v199 = vld [vmem:[%s196] sm:$0xff]
        %v200 = vld [vmem:[%s196 + $0x8] sm:$0xff]
        %v201 = vld [vmem:[%s196 + $0x10] sm:$0xff]
        %v202 = vld [vmem:[%s196 + $0x18] sm:$0xff]
        %v203 = vld [vmem:[%s196 + $0x20] sm:$0xff]
        %v204 = vld [vmem:[%s196 + $0x28] sm:$0xff]
        %v205 = vld [vmem:[%s196 + $0x30] sm:$0xff]
        %v206 = vld [vmem:[%s196 + $0x38] sm:$0xff]
        %v207 = vld [vmem:[%s196 + $0x40] sm:$0xff]
        %v208 = vld [vmem:[%s196 + $0x48] sm:$0xff]
        %v209 = vld [vmem:[%s196 + $0x50] sm:$0xff]
        %v210 = vld [vmem:[%s196 + $0x58] sm:$0xff]
        %v211 = vld [vmem:[%s196 + $0x60] sm:$0xff]
        %v212 = vld [vmem:[%s196 + $0x68] sm:$0xff]
        %v213 = vld [vmem:[%s196 + $0x70] sm:$0xff]
        %v214 = vld [vmem:[%s196 + $0x78] sm:$0xff]
        %v215 = vld [vmem:[%s196 + $0x80] sm:$0xff]
        %v216 = vld [vmem:[%s196 + $0x88] sm:$0xff]
        %v217 = vld [vmem:[%s196 + $0x90] sm:$0xff]
        %v218 = vld [vmem:[%s196 + $0x98] sm:$0xff]
        %v219 = vld [vmem:[%s196 + $0xa0] sm:$0xff]
        %v220 = vld [vmem:[%s196 + $0xa8] sm:$0xff]
        %v221 = vld [vmem:[%s196 + $0xb0] sm:$0xff]
        %v222 = vld [vmem:[%s196 + $0xb8] sm:$0xff]
        %v223 = vld [vmem:[%s196 + $0xc0] sm:$0xff]
        %v224 = vld [vmem:[%s196 + $0xc8] sm:$0xff]
        %v225 = vld [vmem:[%s196 + $0xd0] sm:$0xff]
        %v226 = vld [vmem:[%s196 + $0xd8] sm:$0xff]
        %v227 = vld [vmem:[%s196 + $0xe0] sm:$0xff]
        %v228 = vld [vmem:[%s196 + $0xe8] sm:$0xff]
        %v229 = vld [vmem:[%s196 + $0xf0] sm:$0xff]
        %v230 = vld [vmem:[%s196 + $0xf8] sm:$0xff]
        %v231 = vld [vmem:[%s1] sm:$0xff]
        %v232 = vld [vmem:[%s1 + $0x8] sm:$0xff]
        %v233 = vld [vmem:[%s1 + $0x10] sm:$0xff]
        %v234 = vld [vmem:[%s1 + $0x18] sm:$0xff]
        %v235 = vld [vmem:[%s1 + $0x20] sm:$0xff]
        %v236 = vld [vmem:[%s1 + $0x28] sm:$0xff]
        %v237 = vld [vmem:[%s1 + $0x30] sm:$0xff]
        %v238 = vld [vmem:[%s1 + $0x38] sm:$0xff]
        %vm239 = vcmask 261120
        %v241 = vsel %vm239, %v199, 0
        %v244 = vsel %vm239, %v200, 0
        %v247 = vsel %vm239, %v201, 0
        %v250 = vsel %vm239, %v202, 0
        %v253 = vsel %vm239, %v203, 0
        %v256 = vsel %vm239, %v204, 0
        %v259 = vsel %vm239, %v205, 0
        %v262 = vsel %vm239, %v206, 0
        %v265 = vsel %vm239, %v207, 0
        %v268 = vsel %vm239, %v208, 0
        %v271 = vsel %vm239, %v209, 0
        %v274 = vsel %vm239, %v210, 0
        %v277 = vsel %vm239, %v211, 0
        %v280 = vsel %vm239, %v212, 0
        %v283 = vsel %vm239, %v213, 0
        %v286 = vsel %vm239, %v214, 0
        %v289 = vsel %vm239, %v215, 0
        %v292 = vsel %vm239, %v216, 0
        %v295 = vsel %vm239, %v217, 0
        %v298 = vsel %vm239, %v218, 0
        %v301 = vsel %vm239, %v219, 0
        %v304 = vsel %vm239, %v220, 0
        %v307 = vsel %vm239, %v221, 0
        %v310 = vsel %vm239, %v222, 0
        %v313 = vsel %vm239, %v223, 0
        %v316 = vsel %vm239, %v224, 0
        %v319 = vsel %vm239, %v225, 0
        %v322 = vsel %vm239, %v226, 0
        %v325 = vsel %vm239, %v227, 0
        %v328 = vsel %vm239, %v228, 0
        %v331 = vsel %vm239, %v229, 0
        %v334 = vsel %vm239, %v230, 0
        %336 = vmatprep.subr.mxu0 0.0
        %337 = vmatpush1.msra.mxu0 0.0
        %338 = vmatprep.subr.mxu0 0.0
        %339 = vmatpush1.msra.mxu0 0.0
        %340 = vmatprep.subr.mxu0 0.0
        %341 = vmatpush1.msra.mxu0 0.0
        %342 = vmatprep.subr.mxu0 0.0
        %343 = vmatpush1.msra.mxu0 0.0
        %344 = vmatprep.subr.mxu0 0.0
        %345 = vmatpush1.msra.mxu0 0.0
        %346 = vmatprep.subr.mxu0 0.0
        %347 = vmatpush1.msra.mxu0 0.0
        %348 = vmatprep.subr.mxu0 0.0
        %349 = vmatpush1.msra.mxu0 0.0
        %350 = vmatprep.subr.mxu0 0.0
        %351 = vmatpush1.msra.mxu0 0.0
        %352 = vmatprep.subr.mxu0 0.0
        %353 = vmatpush1.msra.mxu0 0.0
        %354 = vmatprep.subr.mxu0 0.0
        %355 = vmatpush1.msra.mxu0 0.0
        %356 = vmatprep.subr.mxu0 0.0
        %357 = vmatpush1.msra.mxu0 0.0
        %358 = vmatprep.subr.mxu0 0.0
        %359 = vmatpush1.msra.mxu0 0.0
        %360 = vmatprep.subr.mxu0 %v238
        %361 = vmatpush1.msra.mxu0 %v237
        %362 = vmatprep.subr.mxu0 %v236
        %363 = vmatpush1.msra.mxu0 %v235
        %364 = vmatprep.subr.mxu0 %v234
        %365 = vmatpush1.msra.mxu0 %v233
        %366 = vmatprep.subr.mxu0 %v232
        %367 = vmatpush1.msra.mxu0 %v231
        %368 = vmatprep.subr.mxu0 0.0
        %369 = vmatpush2.msra.mxu0 0.0
        %370 = vmatprep.subr.mxu0 0.0
        %371 = vmatpush2.msra.mxu0 0.0
        %372 = vmatprep.subr.mxu0 0.0
        %373 = vmatpush2.msra.mxu0 0.0
        %374 = vmatprep.subr.mxu0 0.0
        %375 = vmatpush2.msra.mxu0 0.0
        %376 = vmatprep.subr.mxu0 0.0
        %377 = vmatpush2.msra.mxu0 0.0
        %378 = vmatprep.subr.mxu0 0.0
        %379 = vmatpush2.msra.mxu0 0.0
        %380 = vmatprep.subr.mxu0 0.0
        %381 = vmatpush2.msra.mxu0 0.0
        %382 = vmatprep.subr.mxu0 0.0
        %383 = vmatpush2.msra.mxu0 0.0
        %384 = vmatprep.subr.mxu0 0.0
        %385 = vmatpush2.msra.mxu0 0.0
        %386 = vmatprep.subr.mxu0 0.0
        %387 = vmatpush2.msra.mxu0 0.0
        %388 = vmatprep.subr.mxu0 0.0
        %389 = vmatpush2.msra.mxu0 0.0
        %390 = vmatprep.subr.mxu0 0.0
        %391 = vmatpush2.msra.mxu0 0.0
        %392 = vmatprep.subr.mxu0 0.0
        %393 = vmatpush2.msra.mxu0 0.0
        %394 = vmatprep.subr.mxu0 0.0
        %395 = vmatpush2.msra.mxu0 0.0
        %396 = vmatprep.subr.mxu0 0.0
        %397 = vmatpush2.msra.mxu0 0.0
        %398 = vmatprep.subr.mxu0 0.0
        %399 = vmatpush2.msra.mxu0 0.0
        %400 = vmatprep.mubr.f32.mxu0 0.0
        %401 = vmatmul.mubr.f32.gmra.mxu0 %v241
        %v402 = vpop.f32.mrf.mxu0
        %v403 = vadd.f32 0.0, %v402
        %v404 = vpop.f32.mrf.mxu0
        %v405 = vadd.f32 0.0, %v404
        %406 = vmatprep.mubr.f32.mxu0 0.0
        %407 = vmatmul.mubr.f32.gmra.mxu0 %v244
        %v408 = vpop.f32.mrf.mxu0
        %v409 = vadd.f32 0.0, %v408
        %v410 = vpop.f32.mrf.mxu0
        %v411 = vadd.f32 0.0, %v410
        %412 = vmatprep.mubr.f32.mxu0 0.0
        %413 = vmatmul.mubr.f32.gmra.mxu0 %v247
        %v414 = vpop.f32.mrf.mxu0
        %v415 = vadd.f32 0.0, %v414
        %v416 = vpop.f32.mrf.mxu0
        %v417 = vadd.f32 0.0, %v416
        %418 = vmatprep.mubr.f32.mxu0 0.0
        %419 = vmatmul.mubr.f32.gmra.mxu0 %v250
        %v420 = vpop.f32.mrf.mxu0
        %v421 = vadd.f32 0.0, %v420
        %v422 = vpop.f32.mrf.mxu0
        %v423 = vadd.f32 0.0, %v422
        %424 = vmatprep.mubr.f32.mxu0 0.0
        %425 = vmatmul.mubr.f32.gmra.mxu0 %v253
        %v426 = vpop.f32.mrf.mxu0
        %v427 = vadd.f32 0.0, %v426
        %v428 = vpop.f32.mrf.mxu0
        %v429 = vadd.f32 0.0, %v428
        %430 = vmatprep.mubr.f32.mxu0 0.0
        %431 = vmatmul.mubr.f32.gmra.mxu0 %v256
        %v432 = vpop.f32.mrf.mxu0
        %v433 = vadd.f32 0.0, %v432
        %v434 = vpop.f32.mrf.mxu0
        %v435 = vadd.f32 0.0, %v434
        %436 = vmatprep.mubr.f32.mxu0 0.0
        %437 = vmatmul.mubr.f32.gmra.mxu0 %v259
        %v438 = vpop.f32.mrf.mxu0
        %v439 = vadd.f32 0.0, %v438
        %v440 = vpop.f32.mrf.mxu0
        %v441 = vadd.f32 0.0, %v440
        %442 = vmatprep.mubr.f32.mxu0 0.0
        %443 = vmatmul.mubr.f32.gmra.mxu0 %v262
        %v444 = vpop.f32.mrf.mxu0
        %v445 = vadd.f32 0.0, %v444
        %v446 = vpop.f32.mrf.mxu0
        %v447 = vadd.f32 0.0, %v446
        %448 = vmatprep.mubr.f32.mxu0 0.0
        %449 = vmatmul.mubr.f32.gmra.mxu0 %v265
        %v450 = vpop.f32.mrf.mxu0
        %v451 = vadd.f32 0.0, %v450
        %v452 = vpop.f32.mrf.mxu0
        %v453 = vadd.f32 0.0, %v452
        %454 = vmatprep.mubr.f32.mxu0 0.0
        %455 = vmatmul.mubr.f32.gmra.mxu0 %v268
        %v456 = vpop.f32.mrf.mxu0
        %v457 = vadd.f32 0.0, %v456
        %v458 = vpop.f32.mrf.mxu0
        %v459 = vadd.f32 0.0, %v458
        %460 = vmatprep.mubr.f32.mxu0 0.0
        %461 = vmatmul.mubr.f32.gmra.mxu0 %v271
        %v462 = vpop.f32.mrf.mxu0
        %v463 = vadd.f32 0.0, %v462
        %v464 = vpop.f32.mrf.mxu0
        %v465 = vadd.f32 0.0, %v464
        %466 = vmatprep.mubr.f32.mxu0 0.0
        %467 = vmatmul.mubr.f32.gmra.mxu0 %v274
        %v468 = vpop.f32.mrf.mxu0
        %v469 = vadd.f32 0.0, %v468
        %v470 = vpop.f32.mrf.mxu0
        %v471 = vadd.f32 0.0, %v470
        %472 = vmatprep.mubr.f32.mxu0 0.0
        %473 = vmatmul.mubr.f32.gmra.mxu0 %v277
        %v474 = vpop.f32.mrf.mxu0
        %v475 = vadd.f32 0.0, %v474
        %v476 = vpop.f32.mrf.mxu0
        %v477 = vadd.f32 0.0, %v476
        %478 = vmatprep.mubr.f32.mxu0 0.0
        %479 = vmatmul.mubr.f32.gmra.mxu0 %v280
        %v480 = vpop.f32.mrf.mxu0
        %v481 = vadd.f32 0.0, %v480
        %v482 = vpop.f32.mrf.mxu0
        %v483 = vadd.f32 0.0, %v482
        %484 = vmatprep.mubr.f32.mxu0 0.0
        %485 = vmatmul.mubr.f32.gmra.mxu0 %v283
        %v486 = vpop.f32.mrf.mxu0
        %v487 = vadd.f32 0.0, %v486
        %v488 = vpop.f32.mrf.mxu0
        %v489 = vadd.f32 0.0, %v488
        %490 = vmatprep.mubr.f32.mxu0 0.0
        %491 = vmatmul.mubr.f32.gmra.mxu0 %v286
        %v492 = vpop.f32.mrf.mxu0
        %v493 = vadd.f32 0.0, %v492
        %v494 = vpop.f32.mrf.mxu0
        %v495 = vadd.f32 0.0, %v494
        %496 = vmatprep.mubr.f32.mxu0 0.0
        %497 = vmatmul.mubr.f32.gmra.mxu0 %v289
        %v498 = vpop.f32.mrf.mxu0
        %v499 = vadd.f32 0.0, %v498
        %v500 = vpop.f32.mrf.mxu0
        %v501 = vadd.f32 0.0, %v500
        %502 = vmatprep.mubr.f32.mxu0 0.0
        %503 = vmatmul.mubr.f32.gmra.mxu0 %v292
        %v504 = vpop.f32.mrf.mxu0
        %v505 = vadd.f32 0.0, %v504
        %v506 = vpop.f32.mrf.mxu0
        %v507 = vadd.f32 0.0, %v506
        %508 = vmatprep.mubr.f32.mxu0 0.0
        %509 = vmatmul.mubr.f32.gmra.mxu0 %v295
        %v510 = vpop.f32.mrf.mxu0
        %v511 = vadd.f32 0.0, %v510
        %v512 = vpop.f32.mrf.mxu0
        %v513 = vadd.f32 0.0, %v512
        %514 = vmatprep.mubr.f32.mxu0 0.0
        %515 = vmatmul.mubr.f32.gmra.mxu0 %v298
        %v516 = vpop.f32.mrf.mxu0
        %v517 = vadd.f32 0.0, %v516
        %v518 = vpop.f32.mrf.mxu0
        %v519 = vadd.f32 0.0, %v518
        %520 = vmatprep.mubr.f32.mxu0 0.0
        %521 = vmatmul.mubr.f32.gmra.mxu0 %v301
        %v522 = vpop.f32.mrf.mxu0
        %v523 = vadd.f32 0.0, %v522
        %v524 = vpop.f32.mrf.mxu0
        %v525 = vadd.f32 0.0, %v524
        %526 = vmatprep.mubr.f32.mxu0 0.0
        %527 = vmatmul.mubr.f32.gmra.mxu0 %v304
        %v528 = vpop.f32.mrf.mxu0
        %v529 = vadd.f32 0.0, %v528
        %v530 = vpop.f32.mrf.mxu0
        %v531 = vadd.f32 0.0, %v530
        %532 = vmatprep.mubr.f32.mxu0 0.0
        %533 = vmatmul.mubr.f32.gmra.mxu0 %v307
        %v534 = vpop.f32.mrf.mxu0
        %v535 = vadd.f32 0.0, %v534
        %v536 = vpop.f32.mrf.mxu0
        %v537 = vadd.f32 0.0, %v536
        %538 = vmatprep.mubr.f32.mxu0 0.0
        %539 = vmatmul.mubr.f32.gmra.mxu0 %v310
        %v540 = vpop.f32.mrf.mxu0
        %v541 = vadd.f32 0.0, %v540
        %v542 = vpop.f32.mrf.mxu0
        %v543 = vadd.f32 0.0, %v542
        %544 = vmatprep.mubr.f32.mxu0 0.0
        %545 = vmatmul.mubr.f32.gmra.mxu0 %v313
        %v546 = vpop.f32.mrf.mxu0
        %v547 = vadd.f32 0.0, %v546
        %v548 = vpop.f32.mrf.mxu0
        %v549 = vadd.f32 0.0, %v548
        %550 = vmatprep.mubr.f32.mxu0 0.0
        %551 = vmatmul.mubr.f32.gmra.mxu0 %v316
        %v552 = vpop.f32.mrf.mxu0
        %v553 = vadd.f32 0.0, %v552
        %v554 = vpop.f32.mrf.mxu0
        %v555 = vadd.f32 0.0, %v554
        %556 = vmatprep.mubr.f32.mxu0 0.0
        %557 = vmatmul.mubr.f32.gmra.mxu0 %v319
        %v558 = vpop.f32.mrf.mxu0
        %v559 = vadd.f32 0.0, %v558
        %v560 = vpop.f32.mrf.mxu0
        %v561 = vadd.f32 0.0, %v560
        %562 = vmatprep.mubr.f32.mxu0 0.0
        %563 = vmatmul.mubr.f32.gmra.mxu0 %v322
        %v564 = vpop.f32.mrf.mxu0
        %v565 = vadd.f32 0.0, %v564
        %v566 = vpop.f32.mrf.mxu0
        %v567 = vadd.f32 0.0, %v566
        %568 = vmatprep.mubr.f32.mxu0 0.0
        %569 = vmatmul.mubr.f32.gmra.mxu0 %v325
        %v570 = vpop.f32.mrf.mxu0
        %v571 = vadd.f32 0.0, %v570
        %v572 = vpop.f32.mrf.mxu0
        %v573 = vadd.f32 0.0, %v572
        %574 = vmatprep.mubr.f32.mxu0 0.0
        %575 = vmatmul.mubr.f32.gmra.mxu0 %v328
        %v576 = vpop.f32.mrf.mxu0
        %v577 = vadd.f32 0.0, %v576
        %v578 = vpop.f32.mrf.mxu0
        %v579 = vadd.f32 0.0, %v578
        %580 = vmatprep.mubr.f32.mxu0 0.0
        %581 = vmatmul.mubr.f32.gmra.mxu0 %v331
        %v582 = vpop.f32.mrf.mxu0
        %v583 = vadd.f32 0.0, %v582
        %v584 = vpop.f32.mrf.mxu0
        %v585 = vadd.f32 0.0, %v584
        %586 = vmatprep.mubr.f32.mxu0 0.0
        %587 = vmatmul.mubr.f32.gmra.mxu0 %v334
        %v588 = vpop.f32.mrf.mxu0
        %v589 = vadd.f32 0.0, %v588
        %v590 = vpop.f32.mrf.mxu0
        %v591 = vadd.f32 0.0, %v590
        %592 = vdwg.mxu0
        %v593 = vld [vmem:[%s2] sm:$0x3]
        %v595 = vlaneseq
        %v596 = vshrl.u32 %v595, 7
        %v597 = vsub.s32 0, %v596
        %v598 = vrot.slane %v593, %v597
        %v599 = vlaneseq
        %v600 = vshrl.u32 %v599, 7
        %v601 = vsub.s32 1, %v600
        %v602 = vrot.slane %v593, %v601
        %v605 = vmul.f32 %v403, %v598
        %v606 = vmul.f32 %v405, %v602
        %v607 = vmul.f32 %v409, %v598
        %v608 = vmul.f32 %v411, %v602
        %v609 = vmul.f32 %v415, %v598
        %v610 = vmul.f32 %v417, %v602
        %v611 = vmul.f32 %v421, %v598
        %v612 = vmul.f32 %v423, %v602
        %v613 = vmul.f32 %v427, %v598
        %v614 = vmul.f32 %v429, %v602
        %v615 = vmul.f32 %v433, %v598
        %v616 = vmul.f32 %v435, %v602
        %v617 = vmul.f32 %v439, %v598
        %v618 = vmul.f32 %v441, %v602
        %v619 = vmul.f32 %v445, %v598
        %v620 = vmul.f32 %v447, %v602
        %v621 = vmul.f32 %v451, %v598
        %v622 = vmul.f32 %v453, %v602
        %v623 = vmul.f32 %v457, %v598
        %v624 = vmul.f32 %v459, %v602
        %v625 = vmul.f32 %v463, %v598
        %v626 = vmul.f32 %v465, %v602
        %v627 = vmul.f32 %v469, %v598
        %v628 = vmul.f32 %v471, %v602
        %v629 = vmul.f32 %v475, %v598
        %v630 = vmul.f32 %v477, %v602
        %v631 = vmul.f32 %v481, %v598
        %v632 = vmul.f32 %v483, %v602
        %v633 = vmul.f32 %v487, %v598
        %v634 = vmul.f32 %v489, %v602
        %v635 = vmul.f32 %v493, %v598
        %v636 = vmul.f32 %v495, %v602
        %v637 = vmul.f32 %v499, %v598
        %v638 = vmul.f32 %v501, %v602
        %v639 = vmul.f32 %v505, %v598
        %v640 = vmul.f32 %v507, %v602
        %v641 = vmul.f32 %v511, %v598
        %v642 = vmul.f32 %v513, %v602
        %v643 = vmul.f32 %v517, %v598
        %v644 = vmul.f32 %v519, %v602
        %v645 = vmul.f32 %v523, %v598
        %v646 = vmul.f32 %v525, %v602
        %v647 = vmul.f32 %v529, %v598
        %v648 = vmul.f32 %v531, %v602
        %v649 = vmul.f32 %v535, %v598
        %v650 = vmul.f32 %v537, %v602
        %v651 = vmul.f32 %v541, %v598
        %v652 = vmul.f32 %v543, %v602
        %v653 = vmul.f32 %v547, %v598
        %v654 = vmul.f32 %v549, %v602
        %v655 = vmul.f32 %v553, %v598
        %v656 = vmul.f32 %v555, %v602
        %v657 = vmul.f32 %v559, %v598
        %v658 = vmul.f32 %v561, %v602
        %v659 = vmul.f32 %v565, %v598
        %v660 = vmul.f32 %v567, %v602
        %v661 = vmul.f32 %v571, %v598
        %v662 = vmul.f32 %v573, %v602
        %v663 = vmul.f32 %v577, %v598
        %v664 = vmul.f32 %v579, %v602
        %v665 = vmul.f32 %v583, %v598
        %v666 = vmul.f32 %v585, %v602
        %v667 = vmul.f32 %v589, %v598
        %v668 = vmul.f32 %v591, %v602
        %v669 = vld [vmem:[%s3] sm:$0x3]
        %v671 = vlaneseq
        %v672 = vshrl.u32 %v671, 7
        %v673 = vsub.s32 0, %v672
        %v674 = vrot.slane %v669, %v673
        %v675 = vlaneseq
        %v676 = vshrl.u32 %v675, 7
        %v677 = vsub.s32 1, %v676
        %v678 = vrot.slane %v669, %v677
        %v681 = vadd.f32 %v605, %v674
        %v682 = vadd.f32 %v606, %v678
        %v683 = vadd.f32 %v607, %v674
        %v684 = vadd.f32 %v608, %v678
        %v685 = vadd.f32 %v609, %v674
        %v686 = vadd.f32 %v610, %v678
        %v687 = vadd.f32 %v611, %v674
        %v688 = vadd.f32 %v612, %v678
        %v689 = vadd.f32 %v613, %v674
        %v690 = vadd.f32 %v614, %v678
        %v691 = vadd.f32 %v615, %v674
        %v692 = vadd.f32 %v616, %v678
        %v693 = vadd.f32 %v617, %v674
        %v694 = vadd.f32 %v618, %v678
        %v695 = vadd.f32 %v619, %v674
        %v696 = vadd.f32 %v620, %v678
        %v697 = vadd.f32 %v621, %v674
        %v698 = vadd.f32 %v622, %v678
        %v699 = vadd.f32 %v623, %v674
        %v700 = vadd.f32 %v624, %v678
        %v701 = vadd.f32 %v625, %v674
        %v702 = vadd.f32 %v626, %v678
        %v703 = vadd.f32 %v627, %v674
        %v704 = vadd.f32 %v628, %v678
        %v705 = vadd.f32 %v629, %v674
        %v706 = vadd.f32 %v630, %v678
        %v707 = vadd.f32 %v631, %v674
        %v708 = vadd.f32 %v632, %v678
        %v709 = vadd.f32 %v633, %v674
        %v710 = vadd.f32 %v634, %v678
        %v711 = vadd.f32 %v635, %v674
        %v712 = vadd.f32 %v636, %v678
        %v713 = vadd.f32 %v637, %v674
        %v714 = vadd.f32 %v638, %v678
        %v715 = vadd.f32 %v639, %v674
        %v716 = vadd.f32 %v640, %v678
        %v717 = vadd.f32 %v641, %v674
        %v718 = vadd.f32 %v642, %v678
        %v719 = vadd.f32 %v643, %v674
        %v720 = vadd.f32 %v644, %v678
        %v721 = vadd.f32 %v645, %v674
        %v722 = vadd.f32 %v646, %v678
        %v723 = vadd.f32 %v647, %v674
        %v724 = vadd.f32 %v648, %v678
        %v725 = vadd.f32 %v649, %v674
        %v726 = vadd.f32 %v650, %v678
        %v727 = vadd.f32 %v651, %v674
        %v728 = vadd.f32 %v652, %v678
        %v729 = vadd.f32 %v653, %v674
        %v730 = vadd.f32 %v654, %v678
        %v731 = vadd.f32 %v655, %v674
        %v732 = vadd.f32 %v656, %v678
        %v733 = vadd.f32 %v657, %v674
        %v734 = vadd.f32 %v658, %v678
        %v735 = vadd.f32 %v659, %v674
        %v736 = vadd.f32 %v660, %v678
        %v737 = vadd.f32 %v661, %v674
        %v738 = vadd.f32 %v662, %v678
        %v739 = vadd.f32 %v663, %v674
        %v740 = vadd.f32 %v664, %v678
        %v741 = vadd.f32 %v665, %v674
        %v742 = vadd.f32 %v666, %v678
        %v743 = vadd.f32 %v667, %v674
        %v744 = vadd.f32 %v668, %v678
        %v745 = vmax.f32 %v681, 0.0
        %v746 = vmax.f32 %v683, 0.0
        %v747 = vmax.f32 %v685, 0.0
        %v748 = vmax.f32 %v687, 0.0
        %v749 = vmax.f32 %v689, 0.0
        %v750 = vmax.f32 %v691, 0.0
        %v751 = vmax.f32 %v693, 0.0
        %v752 = vmax.f32 %v695, 0.0
        %v753 = vmax.f32 %v697, 0.0
        %v754 = vmax.f32 %v699, 0.0
        %v755 = vmax.f32 %v701, 0.0
        %v756 = vmax.f32 %v703, 0.0
        %v757 = vmax.f32 %v705, 0.0
        %v758 = vmax.f32 %v707, 0.0
        %v759 = vmax.f32 %v709, 0.0
        %v760 = vmax.f32 %v711, 0.0
        %v761 = vmax.f32 %v713, 0.0
        %v762 = vmax.f32 %v715, 0.0
        %v763 = vmax.f32 %v717, 0.0
        %v764 = vmax.f32 %v719, 0.0
        %v765 = vmax.f32 %v721, 0.0
        %v766 = vmax.f32 %v723, 0.0
        %v767 = vmax.f32 %v725, 0.0
        %v768 = vmax.f32 %v727, 0.0
        %v769 = vmax.f32 %v729, 0.0
        %v770 = vmax.f32 %v731, 0.0
        %v771 = vmax.f32 %v733, 0.0
        %v772 = vmax.f32 %v735, 0.0
        %v773 = vmax.f32 %v737, 0.0
        %v774 = vmax.f32 %v739, 0.0
        %v775 = vmax.f32 %v741, 0.0
        %v776 = vmax.f32 %v743, 0.0
        %777 = vst [vmem:[%s191] sm:$0xff] %v745
        %778 = vst [vmem:[%s191 + $0x10] sm:$0xff] %v746
        %779 = vst [vmem:[%s191 + $0x20] sm:$0xff] %v747
        %780 = vst [vmem:[%s191 + $0x30] sm:$0xff] %v748
        %781 = vst [vmem:[%s191 + $0x40] sm:$0xff] %v749
        %782 = vst [vmem:[%s191 + $0x50] sm:$0xff] %v750
        %783 = vst [vmem:[%s191 + $0x60] sm:$0xff] %v751
        %784 = vst [vmem:[%s191 + $0x70] sm:$0xff] %v752
        %785 = vst [vmem:[%s191 + $0x80] sm:$0xff] %v753
        %786 = vst [vmem:[%s191 + $0x90] sm:$0xff] %v754
        %787 = vst [vmem:[%s191 + $0xa0] sm:$0xff] %v755
        %788 = vst [vmem:[%s191 + $0xb0] sm:$0xff] %v756
        %789 = vst [vmem:[%s191 + $0xc0] sm:$0xff] %v757
        %790 = vst [vmem:[%s191 + $0xd0] sm:$0xff] %v758
        %791 = vst [vmem:[%s191 + $0xe0] sm:$0xff] %v759
        %792 = vst [vmem:[%s191 + $0xf0] sm:$0xff] %v760
        %793 = vst [vmem:[%s191 + $0x100] sm:$0xff] %v761
        %794 = vst [vmem:[%s191 + $0x110] sm:$0xff] %v762
        %795 = vst [vmem:[%s191 + $0x120] sm:$0xff] %v763
        %796 = vst [vmem:[%s191 + $0x130] sm:$0xff] %v764
        %797 = vst [vmem:[%s191 + $0x140] sm:$0xff] %v765
        %798 = vst [vmem:[%s191 + $0x150] sm:$0xff] %v766
        %799 = vst [vmem:[%s191 + $0x160] sm:$0xff] %v767
        %800 = vst [vmem:[%s191 + $0x170] sm:$0xff] %v768
        %801 = vst [vmem:[%s191 + $0x180] sm:$0xff] %v769
        %802 = vst [vmem:[%s191 + $0x190] sm:$0xff] %v770
        %803 = vst [vmem:[%s191 + $0x1a0] sm:$0xff] %v771
        %804 = vst [vmem:[%s191 + $0x1b0] sm:$0xff] %v772
        %805 = vst [vmem:[%s191 + $0x1c0] sm:$0xff] %v773
        %806 = vst [vmem:[%s191 + $0x1d0] sm:$0xff] %v774
        %807 = vst [vmem:[%s191 + $0x1e0] sm:$0xff] %v775
        %808 = vst [vmem:[%s191 + $0x1f0] sm:$0xff] %v776
        %809 = vst [vmem:[%s191 + $0x8] sm:$0xff] %v682
        %810 = vst [vmem:[%s191 + $0x18] sm:$0xff] %v684
        %811 = vst [vmem:[%s191 + $0x28] sm:$0xff] %v686
        %812 = vst [vmem:[%s191 + $0x38] sm:$0xff] %v688
        %813 = vst [vmem:[%s191 + $0x48] sm:$0xff] %v690
        %814 = vst [vmem:[%s191 + $0x58] sm:$0xff] %v692
        %815 = vst [vmem:[%s191 + $0x68] sm:$0xff] %v694
        %816 = vst [vmem:[%s191 + $0x78] sm:$0xff] %v696
        %817 = vst [vmem:[%s191 + $0x88] sm:$0xff] %v698
        %818 = vst [vmem:[%s191 + $0x98] sm:$0xff] %v700
        %819 = vst [vmem:[%s191 + $0xa8] sm:$0xff] %v702
        %820 = vst [vmem:[%s191 + $0xb8] sm:$0xff] %v704
        %821 = vst [vmem:[%s191 + $0xc8] sm:$0xff] %v706
        %822 = vst [vmem:[%s191 + $0xd8] sm:$0xff] %v708
        %823 = vst [vmem:[%s191 + $0xe8] sm:$0xff] %v710
        %824 = vst [vmem:[%s191 + $0xf8] sm:$0xff] %v712
        %825 = vst [vmem:[%s191 + $0x108] sm:$0xff] %v714
        %826 = vst [vmem:[%s191 + $0x118] sm:$0xff] %v716
        %827 = vst [vmem:[%s191 + $0x128] sm:$0xff] %v718
        %828 = vst [vmem:[%s191 + $0x138] sm:$0xff] %v720
        %829 = vst [vmem:[%s191 + $0x148] sm:$0xff] %v722
        %830 = vst [vmem:[%s191 + $0x158] sm:$0xff] %v724
        %831 = vst [vmem:[%s191 + $0x168] sm:$0xff] %v726
        %832 = vst [vmem:[%s191 + $0x178] sm:$0xff] %v728
        %833 = vst [vmem:[%s191 + $0x188] sm:$0xff] %v730
        %834 = vst [vmem:[%s191 + $0x198] sm:$0xff] %v732
        %835 = vst [vmem:[%s191 + $0x1a8] sm:$0xff] %v734
        %836 = vst [vmem:[%s191 + $0x1b8] sm:$0xff] %v736
        %837 = vst [vmem:[%s191 + $0x1c8] sm:$0xff] %v738
        %838 = vst [vmem:[%s191 + $0x1d8] sm:$0xff] %v740
        %839 = vst [vmem:[%s191 + $0x1e8] sm:$0xff] %v742
        %840 = vst [vmem:[%s191 + $0x1f8] sm:$0xff] %v744
        %s841 = sand.u32 %s115, 1
        %s842 = scalar_lea.sflag [#allocation3], %s841
        %s843 = sand.u32 %s115, 1
        %s844 = smul.addr %s843, 512
        %s845 = scalar_lea.vmem [#allocation2], %s844
        // Predicated region
        $region37: #{tpu_custom_call.1} parent=35 // pred_check
          %p846 = pneg %p125
        $region38: #{tpu_custom_call.1} parent=35 // pred_check_branch
          %848 = sbr.rel (%p846) target = $region40
        $region39: #{tpu_custom_call.1} parent=35 // pred_region
          %s849 = smul.u32 32, %s18
          %s851 = ssub.s32 8192, 8192
          %852 = vsyncadd %s842, %s851
          %s853 = smul.addr %s849, 2
          %s854 = smul.addr %s853, 128
          %s855 = scalar_lea.hbm %s4, %s854
          %s856 = sshll.u32 %s845, 4
          %s857 = int_to_ptr.vmem [resolvable:$true] %s856
          %862 = dma.vmem_to_hbm [thread:$0]  %s857, 8192, %s855, %s842, 256, 256, 16
        $region40: #{tpu_custom_call.1} parent=35 // pred_fallthru
          _
      $region36: #{tpu_custom_call.1} parent=5 // pred_fallthru
        _
      %p863 = scmp.le.s32.totalorder 2, %s13
      // Predicated region
      $region41: #{tpu_custom_call.1} parent=5 // pred_check
        %p864 = pneg %p863
      $region42: #{tpu_custom_call.1} parent=5 // pred_check_branch
        %866 = sbr.rel (%p864) target = $region44
      $region43: #{tpu_custom_call.1} parent=5 // pred_region
        %s867 = ssub.s32 %s13, 2
        // Predicated region
        $region45: #{tpu_custom_call.1} parent=43 // pred_check
          %p868 = pneg %p131
        $region46: #{tpu_custom_call.1} parent=43 // pred_check_branch
          %870 = sbr.rel (%p868) target = $region48
        $region47: #{tpu_custom_call.1} parent=43 // pred_region
          %s871 = sand.u32 %s116, 1
          %s872 = scalar_lea.sflag [#allocation3], %s871
          %s873 = sand.u32 %s116, 1
          %s874 = smul.addr %s873, 512
          %s875 = scalar_lea.vmem [#allocation2], %s874
          %876 = dma.done %s872, 8192
        $region48: #{tpu_custom_call.1} parent=43 // pred_fallthru
          _
      $region44: #{tpu_custom_call.1} parent=5 // pred_fallthru
        _
    $region6: #{tpu_custom_call.1} parent=1 // loop_footer
      %s17 = sadd.s32 1, %s13
    $region7: #{tpu_custom_call.1} parent=1 // loop_footer_branch
      %12 = sbr.rel target = $region3
    $region8: #{tpu_custom_call.1} parent=1 // loop_exit
      _
    %877 = vsyncpa [#allocation3], 1
    %s878 = scalar_lea.sflag [#allocation3], 1
    %879 = vsyncpa %s878, 1

</llo_original>
